<compile_context>
chip_gen: v7x
topology: tpu7x:2x2x1
jax: 0.10.0
libtpu: 0.0.40
codegen_flags: <defaults>
</compile_context>

<pallas_src>
import jax
import jax.numpy as jnp
from jax.experimental import pallas as pl
from jax.experimental.pallas import tpu as pltpu


def _round_up(x, m):
    return ((x + m - 1) // m) * m


def _num_tensorcores():
    """Best-effort TensorCores-per-device count (v7x = 2); falls back to 1."""
    try:
        info = pltpu.get_tpu_info()
        for attr in ("num_cores", "core_count", "num_tensorcores", "tensorcore_count"):
            v = getattr(info, attr, None)
            if isinstance(v, int) and v > 0:
                return v
    except Exception:
        pass
    try:
        v = getattr(jax.local_devices()[0], "num_cores", None)
        if isinstance(v, int) and v > 0:
            return v
    except Exception:
        pass
    return 1


def make_lambda_pallas(func, *, lane_block=512, target_block_bytes=4 << 20,
                       min_pallas_bytes=1 << 20):
    """Build a callable applying elementwise `func` via a Pallas TPU kernel.

    lane_block:         max lane (last-dim) width of the streamed slab; multiple of 128.
    target_block_bytes: target per-block input size (~4 MiB amortizes grid-step overhead).
    min_pallas_bytes:   tensors smaller than this just call func(x) in plain JAX.
    """
    assert lane_block % 128 == 0, "lane_block must be a multiple of 128"

    def kernel(x_ref, o_ref):
        # Hot path: elementwise func on the VPU over the current tile.
        o_ref[...] = func(x_ref[...]).astype(o_ref.dtype)

    def apply(x):
        orig_shape = x.shape
        in_dtype = x.dtype
        n = int(x.size)
        in_itemsize = jnp.dtype(in_dtype).itemsize

        # Small-tensor fast path: dispatch + pipeline prologue would dominate.
        if n == 0 or n * in_itemsize < min_pallas_bytes:
            return func(x)

        # Preserve func's natural output dtype (elementwise contract).
        out_dtype = jax.eval_shape(
            func, jax.ShapeDtypeStruct((8, 128), in_dtype)).dtype
        out_itemsize = jnp.dtype(out_dtype).itemsize

        # Sublane alignment from the NARROWER of in/out dtypes so narrowing
        # funcs (f32 -> bf16/int8) still emit dense, unmasked packed stores.
        narrow = max(1, min(in_itemsize, out_itemsize, 4))
        min_rows = max(8, 32 // narrow)

        # Lane-dense layout: prefer an L (multiple of 128) that divides n so
        # no padding is needed -> zero extra full-array HBM copies.
        L = None
        for cand in range(lane_block, 0, -128):
            if n % cand == 0 and n // cand >= min_rows:
                L = cand
                break
        if L is None:
            for cand in range(lane_block, 0, -128):
                if n % cand == 0:
                    L = cand
                    break
        padded = L is None
        if padded:
            L = 128  # tail-only pad of < 128 elements

        rows = pl.cdiv(n, L)
        padded_n = rows * L

        # Row block: aim at ~target_block_bytes of input, dtype-aligned.
        row_block = (target_block_bytes // (L * in_itemsize)) // min_rows * min_rows
        row_block = max(min_rows, row_block)
        if row_block >= rows:
            row_block = rows  # single full-extent block (always layout-legal)
        num_blocks = pl.cdiv(rows, row_block)

        # Multi-TensorCore chips (v7x): keep >= 2 pipelined steps per core so
        # each core overlaps read DMA / compute / writeback. Skip on 1-TC chips.
        num_cores = _num_tensorcores()
        if num_cores > 1:
            min_blocks = 2 * num_cores
            if num_blocks < min_blocks and rows >= min_blocks * min_rows:
                row_block = max(min_rows, (rows // min_blocks) // min_rows * min_rows)
                num_blocks = pl.cdiv(rows, row_block)

        flat = x.reshape(-1)
        if padded:
            # Rare path: < 128 padded elements; allow_input_fusion lets XLA
            # fuse the pad/reshape into the kernel's input DMA.
            flat = jnp.pad(flat, (0, padded_n - n))
        x2d = flat.reshape(rows, L)

        # VMEM budget: (in + out) block, double buffered, plus headroom.
        block_bytes = row_block * L * (in_itemsize + out_itemsize)
        vmem_limit = int(min(64 << 20, max(16 << 20, 2 * block_bytes + (4 << 20))))

        out2d = pl.pallas_call(
            kernel,
            out_shape=jax.ShapeDtypeStruct((rows, L), out_dtype),
            grid=(num_blocks,),
            in_specs=[pl.BlockSpec((row_block, L), lambda i: (i, 0))],
            out_specs=pl.BlockSpec((row_block, L), lambda i: (i, 0)),
            compiler_params=pltpu.CompilerParams(
                dimension_semantics=("parallel",),
                vmem_limit_bytes=vmem_limit,
                allow_input_fusion=[True] if padded else None,
            ),
        )(x2d)

        if padded:
            # TODO(synk): this slice still materializes one output copy; only
            # hit when no multiple of 128 divides x.size.
            return out2d.reshape(-1)[:n].reshape(orig_shape)
        return out2d.reshape(orig_shape)

    return apply


if __name__ == "__main__":
    # Example lambda: func(x) = relu(x) * 2 + 1  (deterministic, elementwise)
    func = lambda x: jax.nn.relu(x) * 2.0 + 1.0

    key = jax.random.PRNGKey(0)
    k1, k2, k3, k4 = jax.random.split(key, 4)

    # --- primary test: module-consistent small NCHW input, forced through Pallas ---
    lambda_pallas = make_lambda_pallas(func, min_pallas_bytes=0)
    x = jax.random.normal(k1, (2, 4, 16, 16), dtype=jnp.float32)  # NCHW
    out = jax.block_until_ready(lambda_pallas(x))
    ref = func(x)
    assert out.shape == x.shape and out.dtype == ref.dtype
    assert jnp.allclose(out, ref, atol=1e-6, rtol=1e-6), "mismatch vs reference (small)"

    # --- larger tensor exercising multi-block, pad-free lane-dense tiling ---
    x_big = jax.random.normal(k2, (8, 16, 64, 64), dtype=jnp.float32)  # 2 MiB
    out_big = jax.block_until_ready(lambda_pallas(x_big))
    ref_big = func(x_big)
    assert jnp.allclose(out_big, ref_big, atol=1e-6, rtol=1e-6), "mismatch (large)"

    # --- ragged size exercising the (rare) padded fallback path ---
    x_rag = jax.random.normal(k3, (5, 7, 11, 3), dtype=jnp.float32)  # 1155 elems
    out_rag = jax.block_until_ready(lambda_pallas(x_rag))
    ref_rag = func(x_rag)
    assert out_rag.shape == x_rag.shape
    assert jnp.allclose(out_rag, ref_rag, atol=1e-6, rtol=1e-6), "mismatch (ragged)"

    # --- dtype-narrowing lambda (f32 -> bf16) exercising narrow-dtype sublane rows ---
    func_q = lambda x: (x * 0.5 + 1.0).astype(jnp.bfloat16)
    lambda_q = make_lambda_pallas(func_q, min_pallas_bytes=0)
    out_q = jax.block_until_ready(lambda_q(x_big))
    ref_q = func_q(x_big)
    assert out_q.dtype == jnp.bfloat16
    assert jnp.allclose(out_q.astype(jnp.float32), ref_q.astype(jnp.float32),
                        atol=1e-2, rtol=1e-2), "mismatch (narrowing)"

    # --- default layer (small-tensor fast path) still matches the module ---
    lambda_default = make_lambda_pallas(func)
    out_fast = jax.block_until_ready(lambda_default(x))
    assert jnp.allclose(out_fast, ref, atol=1e-6, rtol=1e-6), "mismatch (fast path)"

    print("KERNEL_OK")
</pallas_src>

<mosaic_0001>
module attributes {stable_mosaic.version = 11 : i64} {
  func.func @kernel(%arg0: i32, %arg1: memref<8x256xf32, #tpu.memory_space<vmem>>, %arg2: memref<8x256xf32, #tpu.memory_space<vmem>>) attributes {dimension_semantics = [#tpu.dimension_semantics<parallel>], iteration_bounds = array<i64: 1>, scalar_prefetch = 0 : i64, scratch_operands = 0 : i64, tpu.core_type = #tpu.core_type<tc>, window_params = [{transform_indices = @transform_0, window_bounds = array<i64: 8, 256>}, {transform_indices = @transform_1, window_bounds = array<i64: 8, 256>}]} {
    %c0 = arith.constant 0 : index
    %c0_0 = arith.constant 0 : index
    %0 = vector.load %arg1[%c0, %c0_0] : memref<8x256xf32, #tpu.memory_space<vmem>>, vector<8x256xf32>
    %cst = arith.constant 0.000000e+00 : f32
    %1 = vector.broadcast %cst : f32 to vector<8x256xf32>
    %2 = arith.maximumf %0, %1 : vector<8x256xf32>
    %cst_1 = arith.constant 2.000000e+00 : f32
    %3 = vector.broadcast %cst_1 : f32 to vector<8x256xf32>
    %4 = arith.mulf %2, %3 : vector<8x256xf32>
    %cst_2 = arith.constant 1.000000e+00 : f32
    %5 = vector.broadcast %cst_2 : f32 to vector<8x256xf32>
    %6 = arith.addf %4, %5 : vector<8x256xf32>
    %c0_3 = arith.constant 0 : index
    %c0_4 = arith.constant 0 : index
    %7 = vector.load %arg2[%c0_3, %c0_4] : memref<8x256xf32, #tpu.memory_space<vmem>>, vector<8x256xf32>
    tpu.vector_store %arg2[%c0_3, %c0_4], %6 {strides = array<i32>} : memref<8x256xf32, #tpu.memory_space<vmem>>, vector<8x256xf32>,
    return
  }
  func.func @transform_0(%arg0: i32) -> (i32, i32) {
    %c0_i32 = arith.constant 0 : i32
    %c0_i32_0 = arith.constant 0 : i32
    return %arg0, %c0_i32 : i32, i32
  }
  func.func @transform_1(%arg0: i32) -> (i32, i32) {
    %c0_i32 = arith.constant 0 : i32
    %c0_i32_0 = arith.constant 0 : i32
    return %arg0, %c0_i32 : i32, i32
  }
}

</mosaic_0001>

<llo_original>
// kernel: tpu_custom_call.1
$region0: #{tpu_custom_call.1}
  #allocation0 [shape = 'u32[]', space=smem, size = 0x4, offset = 0x4, fixed_abs, tag = 'smem constant byte address 0x4 - core index']
  #allocation1 [shape = 'u32[144,128]{1,0:T(1,128)}', space=vmem, size = 0x12000, scoped, tag = 'internal scratch']
  %s0 = inlined_call_operand.hbm [shape: f32[8,256], index: 0, kind: input, shape index: {}]
  %s1 = inlined_call_operand.hbm [shape: f32[8,256], index: 1, kind: output, shape index: {}]
  %s2 = sld [smem:[#allocation0]]
  $region18: #{tpu_custom_call.1} parent=0
    _
  %s4 = ssub.s32 1, %s2
  %s5 = scalar_select 0, %s4, %s2
  $region1: #{tpu_custom_call.1} parent=0
    #allocation2 [shape = 'u8[8192]{0}', space=vmem, size = 0x2000, scoped, tag = 'input window, operand 0, single buffered']
    #allocation3 [shape = 's32[1]{0}', space=sflag, size = 0x4, scoped, tag = 'scoped memory for tpu_custom_call.1']
    #allocation4 [shape = 's32[1]{0}', space=sflag, size = 0x4, scoped, tag = 'scoped memory for tpu_custom_call.1']
    #allocation5 [shape = 'u8[8192]{0}', space=vmem, size = 0x2000, scoped, tag = 'output window, operand 0, single buffered']
    %6 = vsyncpa [#allocation3], 0
    %7 = vsyncpa [#allocation4], 0
    // Predicated region
    $region2: #{tpu_custom_call.1} parent=1 // pred_check
      _
    $region3: #{tpu_custom_call.1} parent=1 // pred_check_branch
      %9 = sbr.rel (0) target = $region5
    $region4: #{tpu_custom_call.1} parent=1 // pred_region
      %s11 = ssub.s32 256, 256
      %12 = vsyncadd [#allocation3], %s11
      %s14 = sshll.u32 [#allocation2], 4
      %s15 = int_to_ptr.vmem [resolvable:$true] %s14
      %17 = dma.hbm_to_vmem [thread:$0]  %s0, 256, %s15, [#allocation3]
    $region5: #{tpu_custom_call.1} parent=1 // pred_fallthru
      _
    // Predicated region
    $region6: #{tpu_custom_call.1} parent=1 // pred_check
      _
    $region7: #{tpu_custom_call.1} parent=1 // pred_check_branch
      %19 = sbr.rel (0) target = $region9
    $region8: #{tpu_custom_call.1} parent=1 // pred_region
      %20 = dma.done [#allocation3], 256
    $region9: #{tpu_custom_call.1} parent=1 // pred_fallthru
      _
    %v21 = vld [vmem:[#allocation2] sm:$0xff]
    %v22 = vld [vmem:[#allocation2 + $0x8] sm:$0xff]
    %v23 = vmax.f32 %v21, 0.0
    %v24 = vmax.f32 %v22, 0.0
    %v25 = vmul.f32 %v23, 2.0
    %v26 = vmul.f32 %v24, 2.0
    %v27 = vadd.f32 %v25, 1.0
    %v28 = vadd.f32 %v26, 1.0
    %29 = vst [vmem:[#allocation5] sm:$0xff] %v27
    %30 = vst [vmem:[#allocation5 + $0x8] sm:$0xff] %v28
    // Predicated region
    $region10: #{tpu_custom_call.1} parent=1 // pred_check
      _
    $region11: #{tpu_custom_call.1} parent=1 // pred_check_branch
      %32 = sbr.rel (0) target = $region13
    $region12: #{tpu_custom_call.1} parent=1 // pred_region
      %s34 = ssub.s32 256, 256
      %35 = vsyncadd [#allocation4], %s34
      %s37 = sshll.u32 [#allocation5], 4
      %s38 = int_to_ptr.vmem [resolvable:$true] %s37
      %40 = dma.vmem_to_hbm [thread:$0]  %s38, 256, %s1, [#allocation4]
    $region13: #{tpu_custom_call.1} parent=1 // pred_fallthru
      _
    // Predicated region
    $region14: #{tpu_custom_call.1} parent=1 // pred_check
      _
    $region15: #{tpu_custom_call.1} parent=1 // pred_check_branch
      %42 = sbr.rel (0) target = $region17
    $region16: #{tpu_custom_call.1} parent=1 // pred_region
      %43 = dma.done [#allocation4], 256
    $region17: #{tpu_custom_call.1} parent=1 // pred_fallthru
      _
    %44 = vsyncpa [#allocation3], 1
    %45 = vsyncpa [#allocation4], 1

</llo_original>
